<compile_context>
chip_gen: v6e
topology: v6e:2x2x1
jax: 0.10.0
libtpu: 0.0.40
codegen_flags: <defaults>
</compile_context>

<pallas_src>
import functools

import numpy as np
import jax
import jax.numpy as jnp
from jax.experimental import pallas as pl
from jax.experimental.pallas import tpu as pltpu


_TM = 512  # row-tile target for mem-bound GEMM / LayerNorm


def _compute_vmem_limit():
    # ~25% headroom below physical VMEM: 48 MiB on v7x (64 MiB), 96 MiB on v5e/v6e (128 MiB).
    try:
        cap = int(pltpu.get_tpu_info().vmem_capacity_bytes)
    except Exception:
        cap = 64 * 1024 * 1024
    return max(32 * 1024 * 1024, (cap * 3) // 4)


_VMEM_LIMIT = _compute_vmem_limit()


def _cparams(n_axes=1):
    return pltpu.CompilerParams(dimension_semantics=("parallel",) * n_axes,
                                vmem_limit_bytes=_VMEM_LIMIT)


def _row_tile(M):
    """Pick a row tile dividing M (no padding on the common path)."""
    if M <= _TM:
        return M, M
    for tm in (_TM, 384, 256, 128, 64, 32, 16, 8):
        if M % tm == 0:
            return tm, M
    return 256, pl.cdiv(M, 256) * 256      # rare ragged fallback -> pad


# ----------------------------------------------------------------------------
# Pallas kernels
# ----------------------------------------------------------------------------
def _matmul_kernel(*refs, activation, res_scales, has_ln, eps):
    i = 0
    x_ref = refs[i]; i += 1
    if has_ln:
        g_ref, bt_ref = refs[i], refs[i + 1]; i += 2
    w_ref, b_ref = refs[i], refs[i + 1]; i += 2
    res_refs = refs[i:i + len(res_scales)]
    o_ref = refs[-1]

    x = x_ref[...].astype(jnp.float32)
    if has_ln:                                           # fused LayerNorm prologue (f32 stats)
        mu = jnp.mean(x, axis=-1, keepdims=True)
        var = jnp.mean(jnp.square(x - mu), axis=-1, keepdims=True)
        x = (x - mu) * jax.lax.rsqrt(var + eps) * g_ref[...] + bt_ref[...]

    acc = jnp.dot(x.astype(jnp.bfloat16), w_ref[...].astype(jnp.bfloat16),
                  preferred_element_type=jnp.float32)
    acc = acc + b_ref[...]                               # (1, N) broadcasts over rows
    if activation == "relu":
        acc = jnp.maximum(acc, 0.0)
    elif activation == "gelu":
        # TODO(synk): tanh-form GELU (EUP tanh); deviates ~1e-3 from torch's exact-erf GELU.
        c0 = 0.7978845608028654
        acc = 0.5 * acc * (1.0 + jnp.tanh(c0 * (acc + 0.044715 * acc * acc * acc)))
    for r_ref, sc in zip(res_refs, res_scales):          # fused residual epilogue(s)
        r = r_ref[...].astype(jnp.float32)
        acc = acc + (r * sc if sc != 1.0 else r)
    o_ref[...] = acc.astype(o_ref.dtype)


def pallas_matmul(x, w, b, activation=None, residual=None, residual2=None,
                  residual2_scale=1.0, ln=None, ln_eps=1e-5):
    """x:(M,K) @ w:(K,N) + b:(N,). Optional fused LayerNorm prologue, ReLU/GELU epilogue and
    fused residual adds. MXU runs in bf16 with f32 accumulation."""
    M, K = x.shape
    N = w.shape[1]

    residuals, res_scales = [], []
    if residual is not None:
        residuals.append(residual); res_scales.append(1.0)
    if residual2 is not None:
        residuals.append(residual2); res_scales.append(float(residual2_scale))

    tm, Mp = _row_tile(M)
    pad = Mp - M
    if pad:
        x = jnp.pad(x, ((0, pad), (0, 0)))
        residuals = [jnp.pad(r, ((0, pad), (0, 0))) for r in residuals]

    kern = functools.partial(_matmul_kernel, activation=activation,
                             res_scales=tuple(res_scales), has_ln=ln is not None, eps=ln_eps)

    args = [x]
    in_specs = [pl.BlockSpec((tm, K), lambda i: (i, 0))]
    if ln is not None:
        g, bt = ln
        args += [g.reshape(1, K), bt.reshape(1, K)]
        in_specs += [pl.BlockSpec((1, K), lambda i: (0, 0)),
                     pl.BlockSpec((1, K), lambda i: (0, 0))]
    args += [w, b.reshape(1, N)]
    in_specs += [pl.BlockSpec((K, N), lambda i: (0, 0)),
                 pl.BlockSpec((1, N), lambda i: (0, 0))]
    args += residuals
    in_specs += [pl.BlockSpec((tm, N), lambda i: (i, 0)) for _ in residuals]

    out = pl.pallas_call(
        kern,
        out_shape=jax.ShapeDtypeStruct((Mp, N), x.dtype),
        grid=(Mp // tm,),
        in_specs=in_specs,
        out_specs=pl.BlockSpec((tm, N), lambda i: (i, 0)),
        compiler_params=_cparams(1),
    )(*args)
    return out[:M] if pad else out


def _layernorm_kernel(x_ref, g_ref, b_ref, o_ref, *, eps):
    x = x_ref[...].astype(jnp.float32)
    mu = jnp.mean(x, axis=-1, keepdims=True)
    var = jnp.mean(jnp.square(x - mu), axis=-1, keepdims=True)
    o_ref[...] = ((x - mu) * jax.lax.rsqrt(var + eps) * g_ref[...] + b_ref[...]).astype(o_ref.dtype)


def pallas_layernorm(x, gamma, beta, eps=1e-5):
    """x:(M,C) LayerNorm over last dim (PyTorch nn.LayerNorm semantics)."""
    M, C = x.shape
    tm, Mp = _row_tile(M)
    pad = Mp - M
    xin = jnp.pad(x, ((0, pad), (0, 0))) if pad else x
    kern = functools.partial(_layernorm_kernel, eps=eps)
    out = pl.pallas_call(
        kern,
        out_shape=jax.ShapeDtypeStruct((Mp, C), x.dtype),
        grid=(Mp // tm,),
        in_specs=[pl.BlockSpec((tm, C), lambda i: (i, 0)),
                  pl.BlockSpec((1, C), lambda i: (0, 0)),
                  pl.BlockSpec((1, C), lambda i: (0, 0))],
        out_specs=pl.BlockSpec((tm, C), lambda i: (i, 0)),
        compiler_params=_cparams(1),
    )(xin, gamma.reshape(1, C), beta.reshape(1, C))
    return out[:M] if pad else out


def _conv3x3_kernel(x_hbm, w_ref, b_ref, o_ref, xbuf, copy_sem, *, TH, W, HP, activation):
    # x_hbm: raw HBM ref (B*(H+2), W+2, Cin) padded images, one per batch stacked along rows.
    # Per grid step: DMA a (TH+2)-row stripe (1-row halo) into VMEM and run 3 MXU dots of
    # contraction depth 3*Cin (one per kernel row), accumulating in f32.
    bi = pl.program_id(0)
    si = pl.program_id(1)
    start = bi * HP + si * TH
    cp = pltpu.make_async_copy(x_hbm.at[pl.ds(start, TH + 2)], xbuf, copy_sem)
    cp.start()
    cp.wait()

    cin = xbuf.shape[-1]
    cout = w_ref.shape[-1]
    acc = jnp.zeros((TH * W, cout), jnp.float32) + b_ref[...].astype(jnp.float32)
    for di in range(3):
        band = xbuf[di:di + TH]                                    # (TH, W+2, Cin)
        patch = jnp.concatenate([band[:, 0:W, :], band[:, 1:W + 1, :], band[:, 2:W + 2, :]],
                                axis=-1).reshape(TH * W, 3 * cin)  # im2col row band in VMEM
        acc = acc + jnp.dot(patch.astype(jnp.bfloat16),
                            w_ref[di].astype(jnp.bfloat16),
                            preferred_element_type=jnp.float32)
    if activation == "relu":
        acc = jnp.maximum(acc, 0.0)
    o_ref[...] = acc.reshape(1, TH, W, cout).astype(o_ref.dtype)


def _pick_row_stripe(h):
    for th in (32, 16, 8, 4, 2, 1):
        if h % th == 0:
            return th
    return h


def pallas_conv3x3(x_nhwc, w_eff, b_eff, activation):
    """3x3 conv, pad 1, weights (3,3,cin,cout) already BN-folded. Row-stripe tiled with halo DMA."""
    b, h, wd, cin = x_nhwc.shape
    cout = w_eff.shape[-1]
    TH = _pick_row_stripe(h)
    ns = h // TH
    HP = h + 2
    xp = jnp.pad(x_nhwc, ((0, 0), (1, 1), (1, 1), (0, 0))).reshape(b * HP, wd + 2, cin)
    w3 = w_eff.reshape(3, 3 * cin, cout)
    kern = functools.partial(_conv3x3_kernel, TH=TH, W=wd, HP=HP, activation=activation)
    return pl.pallas_call(
        kern,
        out_shape=jax.ShapeDtypeStruct((b, h, wd, cout), x_nhwc.dtype),
        grid=(b, ns),
        in_specs=[
            pl.BlockSpec(memory_space=pl.ANY),                      # padded images stay in HBM
            pl.BlockSpec((3, 3 * cin, cout), lambda bi, si: (0, 0, 0)),
            pl.BlockSpec((1, cout), lambda bi, si: (0, 0)),
        ],
        out_specs=pl.BlockSpec((1, TH, wd, cout), lambda bi, si: (bi, si, 0, 0)),
        scratch_shapes=[pltpu.VMEM((TH + 2, wd + 2, cin), x_nhwc.dtype),
                        pltpu.SemaphoreType.DMA],
        compiler_params=_cparams(2),
    )(xp, w3, b_eff.reshape(1, cout))


def _wattn_kernel(q_ref, k_ref, v_ref, bias_ref, *rest, num_heads, has_mask):
    if has_mask:
        mask_ref, o_ref = rest
    else:
        (o_ref,) = rest
    C = q_ref.shape[-1]
    D = C // num_heads
    mask = mask_ref[...].astype(jnp.float32) if has_mask else None
    for h in range(num_heads):                            # per-head; results stored immediately
        qh = q_ref[:, :, h * D:(h + 1) * D].astype(jnp.bfloat16)   # scale pre-folded into qkv_w
        kh = k_ref[:, :, h * D:(h + 1) * D].astype(jnp.bfloat16)
        vh = v_ref[:, :, h * D:(h + 1) * D].astype(jnp.bfloat16)
        s = jnp.einsum("bqd,bkd->bqk", qh, kh, preferred_element_type=jnp.float32)
        s = s + bias_ref[h].astype(jnp.float32)
        if has_mask:
            s = s + mask
        s = s - jnp.max(s, axis=-1, keepdims=True)
        e = jnp.exp(s)
        p = e * pl.reciprocal(jnp.sum(e, axis=-1, keepdims=True), approx=True)
        oh = jnp.einsum("bqk,bkd->bqd", p.astype(jnp.bfloat16), vh,
                        preferred_element_type=jnp.float32)
        o_ref[:, :, h * D:(h + 1) * D] = oh.astype(o_ref.dtype)


def _pick_wb(nw):
    for wb in (16, 8, 4, 2, 1):
        if nw % wb == 0:
            return wb
    return 1


def pallas_window_attention(q, k, v, bias, *, windows_per_image, mask=None):
    """q:(NW,Nq,C) k,v:(NW,Nk,C) bias:(H,Nq,Nk) mask:None or (windows_per_image,Nq,Nk).

    Processes a fixed chunk of windows per grid step (VMEM bounded independent of image size);
    bias/mask stay resident; heads split inside the kernel; q pre-scaled via folded weights."""
    NW, Nq, C = q.shape
    Nk = k.shape[1]
    H = bias.shape[0]
    WB = _pick_wb(windows_per_image)
    cpi = windows_per_image // WB
    assert NW % WB == 0

    kern = functools.partial(_wattn_kernel, num_heads=H, has_mask=mask is not None)
    in_specs = [
        pl.BlockSpec((WB, Nq, C), lambda i: (i, 0, 0)),
        pl.BlockSpec((WB, Nk, C), lambda i: (i, 0, 0)),
        pl.BlockSpec((WB, Nk, C), lambda i: (i, 0, 0)),
        pl.BlockSpec((H, Nq, Nk), lambda i: (0, 0, 0)),
    ]
    args = [q, k, v, bias]
    if mask is not None:
        assert mask.shape == (windows_per_image, Nq, Nk)
        if cpi == 1:
            mspec = pl.BlockSpec((WB, Nq, Nk), lambda i: (0, 0, 0))
        else:
            mspec = pl.BlockSpec((WB, Nq, Nk), lambda i: (i % cpi, 0, 0))  # periodic per image
        in_specs.append(mspec)
        args.append(mask.astype(jnp.float32))
    return pl.pallas_call(
        kern,
        out_shape=jax.ShapeDtypeStruct((NW, Nq, C), q.dtype),
        grid=(NW // WB,),
        in_specs=in_specs,
        out_specs=pl.BlockSpec((WB, Nq, C), lambda i: (i, 0, 0)),
        compiler_params=_cparams(1),
    )(*args)


# ----------------------------------------------------------------------------
# Plain-JAX glue helpers
# ----------------------------------------------------------------------------
def window_partition(x, ws):
    b, h, w, c = x.shape
    x = x.reshape(b, h // ws, ws, w // ws, ws, c)
    return x.transpose(0, 1, 3, 2, 4, 5).reshape(-1, ws, ws, c)


def window_reverse(windows, ws, h, w):
    b = windows.shape[0] // (h * w // ws // ws)
    x = windows.reshape(b, h // ws, w // ws, ws, ws, -1)
    return x.transpose(0, 1, 3, 2, 4, 5).reshape(b, h, w, -1)


def conv3x3_bn(x_nhwc, w, bn, activation):
    """3x3 conv (pad 1, no bias) + BatchNorm (eval) folded into the Pallas conv kernel."""
    gamma, beta, mean, var = bn
    scale = gamma / jnp.sqrt(var + 1e-5)
    w_eff = w * scale[None, None, None, :]              # (3,3,cin,cout)
    b_eff = beta - mean * scale
    return pallas_conv3x3(x_nhwc, w_eff, b_eff, activation)


def eca_gate(x_nhwc, conv_w):
    """ECA: global avg-pool per channel, k=3 conv1d over channels, sigmoid, scale (tiny op)."""
    y = jnp.mean(x_nhwc, axis=(1, 2))                   # (b, c)
    yp = jnp.pad(y, ((0, 0), (1, 1)))
    y2 = conv_w[0] * yp[:, :-2] + conv_w[1] * yp[:, 1:-1] + conv_w[2] * yp[:, 2:]
    s = jax.nn.sigmoid(y2)
    return x_nhwc * s[:, None, None, :]


def eca_basic_block(x_nhwc, p):
    """ECABasicBlock: conv-bn-relu, conv-bn, ECA, +residual, relu."""
    out = conv3x3_bn(x_nhwc, p["conv1_w"], p["bn1"], activation="relu")
    out = conv3x3_bn(out, p["conv2_w"], p["bn2"], activation=None)
    out = eca_gate(out, p["eca_w"])
    out = jnp.maximum(out + x_nhwc, 0.0)
    return out


# ----------------------------------------------------------------------------
# Relative position indices / attention mask (same math as HAT)
# ----------------------------------------------------------------------------
def calc_rpi_sa(ws):
    coords = jnp.stack(jnp.meshgrid(jnp.arange(ws), jnp.arange(ws), indexing="ij"))
    cf = coords.reshape(2, -1)
    rel = (cf[:, :, None] - cf[:, None, :]).transpose(1, 2, 0) + (ws - 1)
    return rel[..., 0] * (2 * ws - 1) + rel[..., 1]


def calc_rpi_oca(ws, wse):
    co = jnp.stack(jnp.meshgrid(jnp.arange(ws), jnp.arange(ws), indexing="ij")).reshape(2, -1)
    ce = jnp.stack(jnp.meshgrid(jnp.arange(wse), jnp.arange(wse), indexing="ij")).reshape(2, -1)
    rel = (ce[:, None, :] - co[:, :, None]).transpose(1, 2, 0) + (ws - wse + 1)
    return rel[..., 0] * (ws + wse - 1) + rel[..., 1]


def calc_attn_mask(h, w, ws, shift):
    img = np.zeros((1, h, w, 1), np.float32)
    cnt = 0
    for hs in (slice(0, -ws), slice(-ws, -shift), slice(-shift, None)):
        for wsl in (slice(0, -ws), slice(-ws, -shift), slice(-shift, None)):
            img[:, hs, wsl, :] = cnt
            cnt += 1
    mw = window_partition(jnp.asarray(img), ws).reshape(-1, ws * ws)
    am = mw[:, None, :] - mw[:, :, None]
    return jnp.where(am != 0, -100.0, 0.0).astype(jnp.float32)   # (nw, n, n)


# ----------------------------------------------------------------------------
# HAB / OCAB / AttenBlocks forward
# ----------------------------------------------------------------------------
def _q_scaled_qkv(p, c, scale, dtype):
    """Fold the attention scale into the q-columns of the qkv projection (constant fold)."""
    qs = jnp.concatenate([jnp.full((c,), scale, dtype), jnp.ones((2 * c,), dtype)])
    return p["qkv_w"] * qs[None, :], p["qkv_b"] * qs


def hab_forward(x, x_size, p, rpi_sa, attn_mask, *, num_heads, window_size, shift_size, conv_scale):
    h, w = x_size
    b, hw, c = x.shape
    d = c // num_heads
    shortcut = x

    # norm1 feeds both the conv branch and attention -> standalone LN kernel.
    xn = pallas_layernorm(x.reshape(-1, c), p["norm1_g"], p["norm1_b"])
    x4 = xn.reshape(b, h, w, c)

    # CAB (ECABasicBlock) conv branch
    conv_x = eca_basic_block(x4, p)                                 # (b,h,w,c)

    # (shifted) window attention
    nw = (h // window_size) * (w // window_size)
    n = window_size * window_size
    shifted = jnp.roll(x4, shift=(-shift_size, -shift_size), axis=(1, 2)) if shift_size > 0 else x4

    xw = window_partition(shifted, window_size).reshape(-1, n, c)   # (b*nw, n, c)
    qkv_w, qkv_b = _q_scaled_qkv(p, c, d ** -0.5, x.dtype)
    qkv = pallas_matmul(xw.reshape(-1, c), qkv_w, qkv_b).reshape(-1, n, 3 * c)
    q, k, v = qkv[..., :c], qkv[..., c:2 * c], qkv[..., 2 * c:]

    bias = p["rpb"][rpi_sa.reshape(-1)].reshape(n, n, num_heads).transpose(2, 0, 1)
    mask = attn_mask if shift_size > 0 else None
    o = pallas_window_attention(q, k, v, bias, windows_per_image=nw, mask=mask)

    shifted_o = window_reverse(o.reshape(-1, window_size, window_size, c), window_size, h, w)
    attn_x = jnp.roll(shifted_o, shift=(shift_size, shift_size), axis=(1, 2)) if shift_size > 0 else shifted_o

    # proj commutes with the window permutation; its epilogue fuses
    #   x = shortcut + proj(attn_x) + conv_scale * conv_x
    x = pallas_matmul(attn_x.reshape(-1, c), p["proj_w"], p["proj_b"],
                      residual=shortcut.reshape(-1, c),
                      residual2=conv_x.reshape(-1, c),
                      residual2_scale=conv_scale).reshape(b, hw, c)

    # MLP: norm2 fused into fc1 prologue, GELU into fc1 epilogue, residual into fc2 epilogue.
    h1 = pallas_matmul(x.reshape(-1, c), p["fc1_w"], p["fc1_b"], activation="gelu",
                       ln=(p["norm2_g"], p["norm2_b"]))
    x = pallas_matmul(h1, p["fc2_w"], p["fc2_b"],
                      residual=x.reshape(-1, c)).reshape(b, hw, c)
    return x


def ocab_forward(x, x_size, p, rpi_oca, *, num_heads, window_size, overlap_win_size):
    h, w = x_size
    b, hw, c = x.shape
    d = c // num_heads
    ws, owsz = window_size, overlap_win_size
    shortcut = x

    # norm1 only feeds the qkv projection -> fused into the GEMM prologue.
    qkv_w, qkv_b = _q_scaled_qkv(p, c, d ** -0.5, x.dtype)
    qkv = pallas_matmul(x.reshape(-1, c), qkv_w, qkv_b,
                        ln=(p["norm1_g"], p["norm1_b"])).reshape(b, h, w, 3 * c)
    q_img = qkv[..., :c]                                           # (b,h,w,c)
    kv_img = qkv[..., c:]                                          # (b,h,w,2c) == cat(k, v)

    nq = ws * ws
    nk = owsz * owsz
    nw = (h // ws) * (w // ws)
    q_windows = window_partition(q_img, ws).reshape(-1, nq, c)

    # TODO(synk): nn.Unfold-equivalent overlapping K/V gather kept in plain JAX.
    pad = (owsz - ws) // 2
    kvp = jnp.pad(kv_img, ((0, 0), (pad, pad), (pad, pad), (0, 0)))
    nh, nww = h // ws, w // ws
    rows = (jnp.arange(nh) * ws)[:, None] + jnp.arange(owsz)[None, :]
    cols = (jnp.arange(nww) * ws)[:, None] + jnp.arange(owsz)[None, :]
    patches = kvp[:, rows][:, :, :, cols]                          # (b, nh, owsz, nww, owsz, 2c)
    patches = patches.transpose(0, 1, 3, 2, 4, 5).reshape(-1, nk, 2 * c)
    k_windows, v_windows = patches[..., :c], patches[..., c:]

    bias = p["rpb"][rpi_oca.reshape(-1)].reshape(nq, nk, num_heads).transpose(2, 0, 1)
    o = pallas_window_attention(q_windows, k_windows, v_windows, bias, windows_per_image=nw)

    xo_img = window_reverse(o.reshape(-1, ws, ws, c), ws, h, w)
    xo = pallas_matmul(xo_img.reshape(-1, c), p["proj_w"], p["proj_b"],
                       residual=shortcut.reshape(-1, c)).reshape(b, hw, c)

    h1 = pallas_matmul(xo.reshape(-1, c), p["fc1_w"], p["fc1_b"], activation="gelu",
                       ln=(p["norm2_g"], p["norm2_b"]))
    xo = pallas_matmul(h1, p["fc2_w"], p["fc2_b"],
                       residual=xo.reshape(-1, c)).reshape(b, hw, c)
    return xo


def atten_blocks_forward(x, x_size, params, weights, cfg):
    for i, bp in enumerate(weights["blocks"]):
        shift = 0 if i % 2 == 0 else cfg["window_size"] // 2
        x = hab_forward(
            x, x_size, bp, params["rpi_sa"], params["attn_mask"],
            num_heads=cfg["num_heads"], window_size=cfg["window_size"],
            shift_size=shift, conv_scale=cfg["conv_scale"])
    x = ocab_forward(
        x, x_size, weights["ocab"], params["rpi_oca"],
        num_heads=cfg["num_heads"], window_size=cfg["window_size"],
        overlap_win_size=cfg["overlap_win_size"])
    # downsample is None in this configuration
    return x


# ----------------------------------------------------------------------------
# Deterministic parameter init
# ----------------------------------------------------------------------------
def init_weights(key, *, dim, num_heads, window_size, overlap_win_size, depth, mlp_ratio):
    keys = iter(jax.random.split(key, 256))

    def nrm(shape, std=0.02):
        return (jax.random.normal(next(keys), shape, jnp.float32) * std).astype(jnp.float32)

    def bn_params():
        return (jnp.ones((dim,), jnp.float32), jnp.zeros((dim,), jnp.float32),
                jnp.zeros((dim,), jnp.float32), jnp.ones((dim,), jnp.float32))

    hidden = int(dim * mlp_ratio)
    blocks = []
    for _ in range(depth):
        blocks.append(dict(
            norm1_g=jnp.ones((dim,)), norm1_b=jnp.zeros((dim,)),
            qkv_w=nrm((dim, 3 * dim)), qkv_b=jnp.zeros((3 * dim,)),
            proj_w=nrm((dim, dim)), proj_b=jnp.zeros((dim,)),
            rpb=nrm(((2 * window_size - 1) ** 2, num_heads)),
            conv1_w=nrm((3, 3, dim, dim)), bn1=bn_params(),
            conv2_w=nrm((3, 3, dim, dim)), bn2=bn_params(),
            eca_w=nrm((3,)),
            norm2_g=jnp.ones((dim,)), norm2_b=jnp.zeros((dim,)),
            fc1_w=nrm((dim, hidden)), fc1_b=jnp.zeros((hidden,)),
            fc2_w=nrm((hidden, dim)), fc2_b=jnp.zeros((dim,)),
        ))
    ocab = dict(
        norm1_g=jnp.ones((dim,)), norm1_b=jnp.zeros((dim,)),
        qkv_w=nrm((dim, 3 * dim)), qkv_b=jnp.zeros((3 * dim,)),
        rpb=nrm(((window_size + overlap_win_size - 1) ** 2, num_heads)),
        proj_w=nrm((dim, dim)), proj_b=jnp.zeros((dim,)),
        norm2_g=jnp.ones((dim,)), norm2_b=jnp.zeros((dim,)),
        fc1_w=nrm((dim, hidden)), fc1_b=jnp.zeros((hidden,)),
        fc2_w=nrm((hidden, dim)), fc2_b=jnp.zeros((dim,)),
    )
    return dict(blocks=blocks, ocab=ocab)


# ----------------------------------------------------------------------------
if __name__ == "__main__":
    key = jax.random.PRNGKey(0)
    k_x, k_w = jax.random.split(key)

    b, h, w = 2, 8, 8
    dim, num_heads, window_size, depth = 32, 2, 4, 2
    mlp_ratio, overlap_ratio, conv_scale = 2.0, 0.5, 0.01
    overlap_win_size = int(window_size * overlap_ratio) + window_size

    cfg = dict(num_heads=num_heads, window_size=window_size,
               overlap_win_size=overlap_win_size, conv_scale=conv_scale)

    weights = init_weights(k_w, dim=dim, num_heads=num_heads, window_size=window_size,
                           overlap_win_size=overlap_win_size, depth=depth, mlp_ratio=mlp_ratio)

    params = dict(
        rpi_sa=calc_rpi_sa(window_size),
        attn_mask=calc_attn_mask(h, w, window_size, window_size // 2),
        rpi_oca=calc_rpi_oca(window_size, overlap_win_size),
    )

    x = jax.random.normal(k_x, (b, h * w, dim), jnp.float32)

    out = atten_blocks_forward(x, (h, w), params, weights, cfg)
    out = jax.block_until_ready(out)
    assert out.shape == (b, h * w, dim) and out.dtype == jnp.float32
    assert bool(jnp.all(jnp.isfinite(out)))
    print("KERNEL_OK")
</pallas_src>

<mosaic_0001>
module attributes {stable_mosaic.version = 11 : i64} {
  func.func @_layernorm_kernel(%arg0: i32, %arg1: memref<128x32xf32, #tpu.memory_space<vmem>>, %arg2: memref<1x32xf32, #tpu.memory_space<vmem>>, %arg3: memref<1x32xf32, #tpu.memory_space<vmem>>, %arg4: memref<128x32xf32, #tpu.memory_space<vmem>>) attributes {dimension_semantics = [#tpu.dimension_semantics<parallel>], iteration_bounds = array<i64: 1>, scalar_prefetch = 0 : i64, scratch_operands = 0 : i64, tpu.core_type = #tpu.core_type<tc>, window_params = [{transform_indices = @transform_0, window_bounds = array<i64: 128, 32>}, {pipeline_mode = #tpu.pipeline_mode<synchronous>, transform_indices = @transform_1, window_bounds = array<i64: 1, 32>}, {pipeline_mode = #tpu.pipeline_mode<synchronous>, transform_indices = @transform_2, window_bounds = array<i64: 1, 32>}, {transform_indices = @transform_3, window_bounds = array<i64: 128, 32>}]} {
    %c0 = arith.constant 0 : index
    %c0_0 = arith.constant 0 : index
    %0 = vector.load %arg1[%c0, %c0_0] : memref<128x32xf32, #tpu.memory_space<vmem>>, vector<128x32xf32>
    %cst = arith.constant dense<0.000000e+00> : vector<128xf32>
    %1 = vector.multi_reduction <add>, %0, %cst [1] : vector<128x32xf32> to vector<128xf32>
    %2 = vector.shape_cast %1 : vector<128xf32> to vector<128x1xf32>
    %cst_1 = arith.constant 3.200000e+01 : f32
    %3 = vector.broadcast %cst_1 : f32 to vector<128x1xf32>
    %4 = arith.divf %2, %3 : vector<128x1xf32>
    %5 = vector.broadcast %4 : vector<128x1xf32> to vector<128x32xf32>
    %6 = arith.subf %0, %5 : vector<128x32xf32>
    %7 = arith.mulf %6, %6 : vector<128x32xf32>
    %cst_2 = arith.constant dense<0.000000e+00> : vector<128xf32>
    %8 = vector.multi_reduction <add>, %7, %cst_2 [1] : vector<128x32xf32> to vector<128xf32>
    %9 = vector.shape_cast %8 : vector<128xf32> to vector<128x1xf32>
    %cst_3 = arith.constant 3.200000e+01 : f32
    %10 = vector.broadcast %cst_3 : f32 to vector<128x1xf32>
    %11 = arith.divf %9, %10 : vector<128x1xf32>
    %12 = vector.broadcast %4 : vector<128x1xf32> to vector<128x32xf32>
    %13 = arith.subf %0, %12 : vector<128x32xf32>
    %cst_4 = arith.constant 9.99999974E-6 : f32
    %14 = vector.broadcast %cst_4 : f32 to vector<128x1xf32>
    %15 = arith.addf %11, %14 : vector<128x1xf32>
    %16 = math.rsqrt %15 : vector<128x1xf32>
    %17 = vector.broadcast %16 : vector<128x1xf32> to vector<128x32xf32>
    %18 = arith.mulf %13, %17 : vector<128x32xf32>
    %c0_5 = arith.constant 0 : index
    %c0_6 = arith.constant 0 : index
    %19 = vector.load %arg2[%c0_5, %c0_6] : memref<1x32xf32, #tpu.memory_space<vmem>>, vector<1x32xf32>
    %20 = vector.broadcast %19 : vector<1x32xf32> to vector<128x32xf32>
    %21 = arith.mulf %18, %20 : vector<128x32xf32>
    %c0_7 = arith.constant 0 : index
    %c0_8 = arith.constant 0 : index
    %22 = vector.load %arg3[%c0_7, %c0_8] : memref<1x32xf32, #tpu.memory_space<vmem>>, vector<1x32xf32>
    %23 = vector.broadcast %22 : vector<1x32xf32> to vector<128x32xf32>
    %24 = arith.addf %21, %23 : vector<128x32xf32>
    %c0_9 = arith.constant 0 : index
    %c0_10 = arith.constant 0 : index
    %25 = vector.load %arg4[%c0_9, %c0_10] : memref<128x32xf32, #tpu.memory_space<vmem>>, vector<128x32xf32>
    tpu.vector_store %arg4[%c0_9, %c0_10], %24 {strides = array<i32>} : memref<128x32xf32, #tpu.memory_space<vmem>>, vector<128x32xf32>,
    return
  }
  func.func @transform_0(%arg0: i32) -> (i32, i32) {
    %c0_i32 = arith.constant 0 : i32
    %c0_i32_0 = arith.constant 0 : i32
    return %arg0, %c0_i32 : i32, i32
  }
  func.func @transform_1(%arg0: i32) -> (i32, i32) {
    %c0_i32 = arith.constant 0 : i32
    %c0_i32_0 = arith.constant 0 : i32
    %c0_i32_1 = arith.constant 0 : i32
    return %c0_i32, %c0_i32_0 : i32, i32
  }
  func.func @transform_2(%arg0: i32) -> (i32, i32) {
    %c0_i32 = arith.constant 0 : i32
    %c0_i32_0 = arith.constant 0 : i32
    %c0_i32_1 = arith.constant 0 : i32
    return %c0_i32, %c0_i32_0 : i32, i32
  }
  func.func @transform_3(%arg0: i32) -> (i32, i32) {
    %c0_i32 = arith.constant 0 : i32
    %c0_i32_0 = arith.constant 0 : i32
    return %arg0, %c0_i32 : i32, i32
  }
}

</mosaic_0001>

<llo_original>
// kernel: tpu_custom_call.1
$region0: #{tpu_custom_call.1}
  #allocation0 [shape = 'u32[]', space=smem, size = 0x4, offset = 0x4, fixed_abs, tag = 'smem constant byte address 0x4 - core index']
  #allocation1 [shape = 'u32[144,128]{1,0:T(1,128)}', space=vmem, size = 0x12000, scoped, tag = 'internal scratch']
  %s0 = inlined_call_operand.vmem [shape: f32[128,32], index: 0, kind: input, shape index: {}]
  %s1 = inlined_call_operand.vmem [shape: f32[1,32], index: 1, kind: input, shape index: {}]
  %s2 = inlined_call_operand.vmem [shape: f32[1,32], index: 2, kind: input, shape index: {}]
  %s3 = inlined_call_operand.vmem [shape: f32[128,32], index: 3, kind: output, shape index: {}]
  %s4 = sld [smem:[#allocation0]]
  $region22: #{tpu_custom_call.1} parent=0
    _
  %s6 = ssub.s32 1, %s4
  %s7 = scalar_select 0, %s6, %s4
  // Predicated region
  $region2: #{tpu_custom_call.1} parent=0 // pred_check
    _
  $region3: #{tpu_custom_call.1} parent=0 // pred_check_branch
    %9 = sbr.rel (0) target = $region5
  $region4: #{tpu_custom_call.1} parent=0 // pred_region
    _
  $region5: #{tpu_custom_call.1} parent=0 // pred_fallthru
    _
  // Predicated region
  $region6: #{tpu_custom_call.1} parent=0 // pred_check
    _
  $region7: #{tpu_custom_call.1} parent=0 // pred_check_branch
    %11 = sbr.rel (0) target = $region9
  $region8: #{tpu_custom_call.1} parent=0 // pred_region
    _
  $region9: #{tpu_custom_call.1} parent=0 // pred_fallthru
    _
  // Predicated region
  $region10: #{tpu_custom_call.1} parent=0 // pred_check
    _
  $region11: #{tpu_custom_call.1} parent=0 // pred_check_branch
    %13 = sbr.rel (0) target = $region13
  $region12: #{tpu_custom_call.1} parent=0 // pred_region
    _
  $region13: #{tpu_custom_call.1} parent=0 // pred_fallthru
    _
  %v14 = vld [vmem:[%s0] sm:$0xff]
  %v15 = vld [vmem:[%s0 + $0x8] sm:$0xff]
  %v16 = vld [vmem:[%s0 + $0x10] sm:$0xff]
  %v17 = vld [vmem:[%s0 + $0x18] sm:$0xff]
  %v18 = vld [vmem:[%s0 + $0x20] sm:$0xff]
  %v19 = vld [vmem:[%s0 + $0x28] sm:$0xff]
  %v20 = vld [vmem:[%s0 + $0x30] sm:$0xff]
  %v21 = vld [vmem:[%s0 + $0x38] sm:$0xff]
  %v22 = vld [vmem:[%s0 + $0x40] sm:$0xff]
  %v23 = vld [vmem:[%s0 + $0x48] sm:$0xff]
  %v24 = vld [vmem:[%s0 + $0x50] sm:$0xff]
  %v25 = vld [vmem:[%s0 + $0x58] sm:$0xff]
  %v26 = vld [vmem:[%s0 + $0x60] sm:$0xff]
  %v27 = vld [vmem:[%s0 + $0x68] sm:$0xff]
  %v28 = vld [vmem:[%s0 + $0x70] sm:$0xff]
  %v29 = vld [vmem:[%s0 + $0x78] sm:$0xff]
  %vm30 = vcmask 261120
  %v31 = vsel %vm30, %v14, 0.0
  %32 = vadd.xlane.f32.xlu0 %v31
  %v33 = vpop.xlane.xlu0 %32
  %v34 = vsel %vm30, %v15, 0.0
  %35 = vadd.xlane.f32.xlu0 %v34
  %v36 = vpop.xlane.xlu0 %35
  %v37 = vsel %vm30, %v16, 0.0
  %38 = vadd.xlane.f32.xlu0 %v37
  %v39 = vpop.xlane.xlu0 %38
  %v40 = vsel %vm30, %v17, 0.0
  %41 = vadd.xlane.f32.xlu0 %v40
  %v42 = vpop.xlane.xlu0 %41
  %v43 = vsel %vm30, %v18, 0.0
  %44 = vadd.xlane.f32.xlu0 %v43
  %v45 = vpop.xlane.xlu0 %44
  %v46 = vsel %vm30, %v19, 0.0
  %47 = vadd.xlane.f32.xlu0 %v46
  %v48 = vpop.xlane.xlu0 %47
  %v49 = vsel %vm30, %v20, 0.0
  %50 = vadd.xlane.f32.xlu0 %v49
  %v51 = vpop.xlane.xlu0 %50
  %v52 = vsel %vm30, %v21, 0.0
  %53 = vadd.xlane.f32.xlu0 %v52
  %v54 = vpop.xlane.xlu0 %53
  %v55 = vsel %vm30, %v22, 0.0
  %56 = vadd.xlane.f32.xlu0 %v55
  %v57 = vpop.xlane.xlu0 %56
  %v58 = vsel %vm30, %v23, 0.0
  %59 = vadd.xlane.f32.xlu0 %v58
  %v60 = vpop.xlane.xlu0 %59
  %v61 = vsel %vm30, %v24, 0.0
  %62 = vadd.xlane.f32.xlu0 %v61
  %v63 = vpop.xlane.xlu0 %62
  %v64 = vsel %vm30, %v25, 0.0
  %65 = vadd.xlane.f32.xlu0 %v64
  %v66 = vpop.xlane.xlu0 %65
  %v67 = vsel %vm30, %v26, 0.0
  %68 = vadd.xlane.f32.xlu0 %v67
  %v69 = vpop.xlane.xlu0 %68
  %v70 = vsel %vm30, %v27, 0.0
  %71 = vadd.xlane.f32.xlu0 %v70
  %v72 = vpop.xlane.xlu0 %71
  %v73 = vsel %vm30, %v28, 0.0
  %74 = vadd.xlane.f32.xlu0 %v73
  %v75 = vpop.xlane.xlu0 %74
  %v76 = vsel %vm30, %v29, 0.0
  %77 = vadd.xlane.f32.xlu0 %v76
  %v78 = vpop.xlane.xlu0 %77
  %v79 = vrcp.pop 32.0
  %v80 = vmul.f32 %v33, %v79
  %v81 = vmul.f32 %v36, %v79
  %v82 = vmul.f32 %v39, %v79
  %v83 = vmul.f32 %v42, %v79
  %v84 = vmul.f32 %v45, %v79
  %v85 = vmul.f32 %v48, %v79
  %v86 = vmul.f32 %v51, %v79
  %v87 = vmul.f32 %v54, %v79
  %v88 = vmul.f32 %v57, %v79
  %v89 = vmul.f32 %v60, %v79
  %v90 = vmul.f32 %v63, %v79
  %v91 = vmul.f32 %v66, %v79
  %v92 = vmul.f32 %v69, %v79
  %v93 = vmul.f32 %v72, %v79
  %v94 = vmul.f32 %v75, %v79
  %v95 = vmul.f32 %v78, %v79
  %v96 = vsub.f32 %v14, %v80
  %v97 = vsub.f32 %v15, %v81
  %v98 = vsub.f32 %v16, %v82
  %v99 = vsub.f32 %v17, %v83
  %v100 = vsub.f32 %v18, %v84
  %v101 = vsub.f32 %v19, %v85
  %v102 = vsub.f32 %v20, %v86
  %v103 = vsub.f32 %v21, %v87
  %v104 = vsub.f32 %v22, %v88
  %v105 = vsub.f32 %v23, %v89
  %v106 = vsub.f32 %v24, %v90
  %v107 = vsub.f32 %v25, %v91
  %v108 = vsub.f32 %v26, %v92
  %v109 = vsub.f32 %v27, %v93
  %v110 = vsub.f32 %v28, %v94
  %v111 = vsub.f32 %v29, %v95
  %v112 = vmul.f32 %v96, %v96
  %v113 = vmul.f32 %v97, %v97
  %v114 = vmul.f32 %v98, %v98
  %v115 = vmul.f32 %v99, %v99
  %v116 = vmul.f32 %v100, %v100
  %v117 = vmul.f32 %v101, %v101
  %v118 = vmul.f32 %v102, %v102
  %v119 = vmul.f32 %v103, %v103
  %v120 = vmul.f32 %v104, %v104
  %v121 = vmul.f32 %v105, %v105
  %v122 = vmul.f32 %v106, %v106
  %v123 = vmul.f32 %v107, %v107
  %v124 = vmul.f32 %v108, %v108
  %v125 = vmul.f32 %v109, %v109
  %v126 = vmul.f32 %v110, %v110
  %v127 = vmul.f32 %v111, %v111
  %v128 = vsel %vm30, %v112, 0.0
  %129 = vadd.xlane.f32.xlu0 %v128
  %v130 = vpop.xlane.xlu0 %129
  %v131 = vsel %vm30, %v113, 0.0
  %132 = vadd.xlane.f32.xlu0 %v131
  %v133 = vpop.xlane.xlu0 %132
  %v134 = vsel %vm30, %v114, 0.0
  %135 = vadd.xlane.f32.xlu0 %v134
  %v136 = vpop.xlane.xlu0 %135
  %v137 = vsel %vm30, %v115, 0.0
  %138 = vadd.xlane.f32.xlu0 %v137
  %v139 = vpop.xlane.xlu0 %138
  %v140 = vsel %vm30, %v116, 0.0
  %141 = vadd.xlane.f32.xlu0 %v140
  %v142 = vpop.xlane.xlu0 %141
  %v143 = vsel %vm30, %v117, 0.0
  %144 = vadd.xlane.f32.xlu0 %v143
  %v145 = vpop.xlane.xlu0 %144
  %v146 = vsel %vm30, %v118, 0.0
  %147 = vadd.xlane.f32.xlu0 %v146
  %v148 = vpop.xlane.xlu0 %147
  %v149 = vsel %vm30, %v119, 0.0
  %150 = vadd.xlane.f32.xlu0 %v149
  %v151 = vpop.xlane.xlu0 %150
  %v152 = vsel %vm30, %v120, 0.0
  %153 = vadd.xlane.f32.xlu0 %v152
  %v154 = vpop.xlane.xlu0 %153
  %v155 = vsel %vm30, %v121, 0.0
  %156 = vadd.xlane.f32.xlu0 %v155
  %v157 = vpop.xlane.xlu0 %156
  %v158 = vsel %vm30, %v122, 0.0
  %159 = vadd.xlane.f32.xlu0 %v158
  %v160 = vpop.xlane.xlu0 %159
  %v161 = vsel %vm30, %v123, 0.0
  %162 = vadd.xlane.f32.xlu0 %v161
  %v163 = vpop.xlane.xlu0 %162
  %v164 = vsel %vm30, %v124, 0.0
  %165 = vadd.xlane.f32.xlu0 %v164
  %v166 = vpop.xlane.xlu0 %165
  %v167 = vsel %vm30, %v125, 0.0
  %168 = vadd.xlane.f32.xlu0 %v167
  %v169 = vpop.xlane.xlu0 %168
  %v170 = vsel %vm30, %v126, 0.0
  %171 = vadd.xlane.f32.xlu0 %v170
  %v172 = vpop.xlane.xlu0 %171
  %v173 = vsel %vm30, %v127, 0.0
  %174 = vadd.xlane.f32.xlu0 %v173
  %v175 = vpop.xlane.xlu0 %174
  %v176 = vmul.f32 %v130, %v79
  %v177 = vmul.f32 %v133, %v79
  %v178 = vmul.f32 %v136, %v79
  %v179 = vmul.f32 %v139, %v79
  %v180 = vmul.f32 %v142, %v79
  %v181 = vmul.f32 %v145, %v79
  %v182 = vmul.f32 %v148, %v79
  %v183 = vmul.f32 %v151, %v79
  %v184 = vmul.f32 %v154, %v79
  %v185 = vmul.f32 %v157, %v79
  %v186 = vmul.f32 %v160, %v79
  %v187 = vmul.f32 %v163, %v79
  %v188 = vmul.f32 %v166, %v79
  %v189 = vmul.f32 %v169, %v79
  %v190 = vmul.f32 %v172, %v79
  %v191 = vmul.f32 %v175, %v79
  %v192 = vadd.f32 %v176, 1e-05
  %v193 = vadd.f32 %v177, 1e-05
  %v194 = vadd.f32 %v178, 1e-05
  %v195 = vadd.f32 %v179, 1e-05
  %v196 = vadd.f32 %v180, 1e-05
  %v197 = vadd.f32 %v181, 1e-05
  %v198 = vadd.f32 %v182, 1e-05
  %v199 = vadd.f32 %v183, 1e-05
  %v200 = vadd.f32 %v184, 1e-05
  %v201 = vadd.f32 %v185, 1e-05
  %v202 = vadd.f32 %v186, 1e-05
  %v203 = vadd.f32 %v187, 1e-05
  %v204 = vadd.f32 %v188, 1e-05
  %v205 = vadd.f32 %v189, 1e-05
  %v206 = vadd.f32 %v190, 1e-05
  %v207 = vadd.f32 %v191, 1e-05
  %v208 = vrsqrt.pop %v192
  %v209 = vrsqrt.pop %v193
  %v210 = vrsqrt.pop %v194
  %v211 = vrsqrt.pop %v195
  %v212 = vrsqrt.pop %v196
  %v213 = vrsqrt.pop %v197
  %v214 = vrsqrt.pop %v198
  %v215 = vrsqrt.pop %v199
  %v216 = vrsqrt.pop %v200
  %v217 = vrsqrt.pop %v201
  %v218 = vrsqrt.pop %v202
  %v219 = vrsqrt.pop %v203
  %v220 = vrsqrt.pop %v204
  %v221 = vrsqrt.pop %v205
  %v222 = vrsqrt.pop %v206
  %v223 = vrsqrt.pop %v207
  %v224 = vmul.f32 %v96, %v208
  %v225 = vmul.f32 %v97, %v209
  %v226 = vmul.f32 %v98, %v210
  %v227 = vmul.f32 %v99, %v211
  %v228 = vmul.f32 %v100, %v212
  %v229 = vmul.f32 %v101, %v213
  %v230 = vmul.f32 %v102, %v214
  %v231 = vmul.f32 %v103, %v215
  %v232 = vmul.f32 %v104, %v216
  %v233 = vmul.f32 %v105, %v217
  %v234 = vmul.f32 %v106, %v218
  %v235 = vmul.f32 %v107, %v219
  %v236 = vmul.f32 %v108, %v220
  %v237 = vmul.f32 %v109, %v221
  %v238 = vmul.f32 %v110, %v222
  %v239 = vmul.f32 %v111, %v223
  %v240 = vld [vmem:[%s1] sm:$0x1]
  %v242 = vlaneseq
  %v243 = vshrl.u32 %v242, 7
  %v244 = vsub.s32 0, %v243
  %v245 = vrot.slane %v240, %v244
  %v247 = vmul.f32 %v224, %v245
  %v248 = vmul.f32 %v225, %v245
  %v249 = vmul.f32 %v226, %v245
  %v250 = vmul.f32 %v227, %v245
  %v251 = vmul.f32 %v228, %v245
  %v252 = vmul.f32 %v229, %v245
  %v253 = vmul.f32 %v230, %v245
  %v254 = vmul.f32 %v231, %v245
  %v255 = vmul.f32 %v232, %v245
  %v256 = vmul.f32 %v233, %v245
  %v257 = vmul.f32 %v234, %v245
  %v258 = vmul.f32 %v235, %v245
  %v259 = vmul.f32 %v236, %v245
  %v260 = vmul.f32 %v237, %v245
  %v261 = vmul.f32 %v238, %v245
  %v262 = vmul.f32 %v239, %v245
  %v263 = vld [vmem:[%s2] sm:$0x1]
  %v265 = vlaneseq
  %v266 = vshrl.u32 %v265, 7
  %v267 = vsub.s32 0, %v266
  %v268 = vrot.slane %v263, %v267
  %v270 = vadd.f32 %v247, %v268
  %v271 = vadd.f32 %v248, %v268
  %v272 = vadd.f32 %v249, %v268
  %v273 = vadd.f32 %v250, %v268
  %v274 = vadd.f32 %v251, %v268
  %v275 = vadd.f32 %v252, %v268
  %v276 = vadd.f32 %v253, %v268
  %v277 = vadd.f32 %v254, %v268
  %v278 = vadd.f32 %v255, %v268
  %v279 = vadd.f32 %v256, %v268
  %v280 = vadd.f32 %v257, %v268
  %v281 = vadd.f32 %v258, %v268
  %v282 = vadd.f32 %v259, %v268
  %v283 = vadd.f32 %v260, %v268
  %v284 = vadd.f32 %v261, %v268
  %v285 = vadd.f32 %v262, %v268
  %286 = vst.msk [vmem:[%s3] sm:$0xff] %vm30, %v270
  %287 = vst.msk [vmem:[%s3 + $0x8] sm:$0xff] %vm30, %v271
  %288 = vst.msk [vmem:[%s3 + $0x10] sm:$0xff] %vm30, %v272
  %289 = vst.msk [vmem:[%s3 + $0x18] sm:$0xff] %vm30, %v273
  %290 = vst.msk [vmem:[%s3 + $0x20] sm:$0xff] %vm30, %v274
  %291 = vst.msk [vmem:[%s3 + $0x28] sm:$0xff] %vm30, %v275
  %292 = vst.msk [vmem:[%s3 + $0x30] sm:$0xff] %vm30, %v276
  %293 = vst.msk [vmem:[%s3 + $0x38] sm:$0xff] %vm30, %v277
  %294 = vst.msk [vmem:[%s3 + $0x40] sm:$0xff] %vm30, %v278
  %295 = vst.msk [vmem:[%s3 + $0x48] sm:$0xff] %vm30, %v279
  %296 = vst.msk [vmem:[%s3 + $0x50] sm:$0xff] %vm30, %v280
  %297 = vst.msk [vmem:[%s3 + $0x58] sm:$0xff] %vm30, %v281
  %298 = vst.msk [vmem:[%s3 + $0x60] sm:$0xff] %vm30, %v282
  %299 = vst.msk [vmem:[%s3 + $0x68] sm:$0xff] %vm30, %v283
  %300 = vst.msk [vmem:[%s3 + $0x70] sm:$0xff] %vm30, %v284
  %301 = vst.msk [vmem:[%s3 + $0x78] sm:$0xff] %vm30, %v285
  // Predicated region
  $region14: #{tpu_custom_call.1} parent=0 // pred_check
    _
  $region15: #{tpu_custom_call.1} parent=0 // pred_check_branch
    %303 = sbr.rel (0) target = $region17
  $region16: #{tpu_custom_call.1} parent=0 // pred_region
    _
  $region17: #{tpu_custom_call.1} parent=0 // pred_fallthru
    _
  // Predicated region
  $region18: #{tpu_custom_call.1} parent=0 // pred_check
    _
  $region19: #{tpu_custom_call.1} parent=0 // pred_check_branch
    %305 = sbr.rel (0) target = $region21
  $region20: #{tpu_custom_call.1} parent=0 // pred_region
    _
  $region21: #{tpu_custom_call.1} parent=0 // pred_fallthru
    _

</llo_original>
